<compile_context>
chip_gen: v7x
topology: tpu7x:2x2x1
jax: 0.10.0
libtpu: 0.0.40
codegen_flags: <defaults>
</compile_context>

<pallas_src>
import math
import functools

import jax
import jax.numpy as jnp
from jax.experimental import pallas as pl
from jax.experimental.pallas import tpu as pltpu


# ---------------------------------------------------------------------------
# In-kernel helpers (traced inside the Pallas kernel bodies)
# ---------------------------------------------------------------------------
def _split_heads(x2d, heads, dh):
    """(L, heads*dh) -> (heads, L, dh) via static lane slices + leading stack."""
    return jnp.stack([x2d[:, h * dh:(h + 1) * dh] for h in range(heads)], axis=0)


def _attend(q2d, k2d, v2d, masked, heads, dh):
    """q2d already scaled. Returns per-head context (heads, Lq, dh) in f32."""
    qh = _split_heads(q2d, heads, dh).astype(jnp.bfloat16)   # (H, Lq, dh)
    kh = _split_heads(k2d, heads, dh).astype(jnp.bfloat16)   # (H, Lk, dh)
    vh = _split_heads(v2d, heads, dh).astype(jnp.bfloat16)   # (H, Lk, dh)

    # batched-head scores, f32 accumulation on the MXU
    scores = jnp.einsum('hqd,hkd->hqk', qh, kh,
                        preferred_element_type=jnp.float32)   # (H, Lq, Lk)
    # mask compare hoisted: `masked` computed once in the caller
    scores = jnp.where(masked[None, :, :], -10000000000.0, scores)

    # softmax in f32; denominator reciprocal via EUP approx path
    m = jnp.max(scores, axis=-1, keepdims=True)
    e = jnp.exp(scores - m)
    denom = jnp.sum(e, axis=-1, keepdims=True)
    attn = e * pl.reciprocal(denom, approx=True)

    return jnp.einsum('hqk,hkd->hqd', attn.astype(jnp.bfloat16), vh,
                      preferred_element_type=jnp.float32)     # (H, Lq, dh)


def _project_out(ctx_hld, wo_ref, bo_ref, ctx_slab, heads, dh):
    """Merge heads via a VMEM slab (no lane concatenate), then one dense matmul."""
    for h in range(heads):
        ctx_slab[:, h * dh:(h + 1) * dh] = ctx_hld[h]
    ctx = ctx_slab[...].astype(jnp.bfloat16)                  # (Lq, D)
    return jnp.dot(ctx, wo_ref[...].astype(jnp.bfloat16),
                   preferred_element_type=jnp.float32) + bo_ref[...]


# ---------------------------------------------------------------------------
# Kernel 1: self-attention (key is value is query) with fused QKV projection
# ---------------------------------------------------------------------------
def _mha_self_kernel(x_ref, mask_ref, wqkv_ref, bqkv_ref, wo_ref, bo_ref,
                     o_ref, ctx_slab, *, heads):
    L, D = x_ref.shape[1], x_ref.shape[2]
    dh = D // heads
    scale = 1.0 / math.sqrt(dh)

    x = x_ref[0]                                  # (L, D) f32
    masked = mask_ref[0] != 0.0                   # (1 or L, L) bool, hoisted

    # fused QKV: one MXU pass with N = 3D, bf16 operands, f32 accumulation
    qkv = jnp.dot(x.astype(jnp.bfloat16), wqkv_ref[...].astype(jnp.bfloat16),
                  preferred_element_type=jnp.float32) + bqkv_ref[...]

    q = qkv[:, 0 * D:1 * D] * scale
    k = qkv[:, 1 * D:2 * D]
    v = qkv[:, 2 * D:3 * D]

    ctx_hld = _attend(q, k, v, masked, heads, dh)
    out = _project_out(ctx_hld, wo_ref, bo_ref, ctx_slab, heads, dh)
    o_ref[0] = out.astype(o_ref.dtype)


def _mha_self(x, mask, p, *, heads):
    B, L, D = x.shape
    mq = mask.shape[1]
    wqkv = jnp.concatenate([p["wq"], p["wk"], p["wv"]], axis=1)   # (D, 3D)
    bqkv = jnp.concatenate([p["bq"], p["bk"], p["bv"]], axis=1)   # (1, 3D)

    kernel = functools.partial(_mha_self_kernel, heads=heads)

    def rep(shape):
        n = len(shape)
        return pl.BlockSpec(shape, lambda b, _n=n: (0,) * _n)

    return pl.pallas_call(
        kernel,
        out_shape=jax.ShapeDtypeStruct((B, L, D), x.dtype),
        grid=(B,),
        in_specs=[
            pl.BlockSpec((1, L, D), lambda b: (b, 0, 0)),     # x
            pl.BlockSpec((1, mq, L), lambda b: (b, 0, 0)),    # mask
            rep((D, 3 * D)), rep((1, 3 * D)),                 # fused Wqkv, bqkv
            rep((D, D)), rep((1, D)),                         # Wo, bo
        ],
        out_specs=pl.BlockSpec((1, L, D), lambda b: (b, 0, 0)),
        scratch_shapes=[pltpu.VMEM((L, D), jnp.float32)],     # head-merge slab
        compiler_params=pltpu.CompilerParams(dimension_semantics=("parallel",)),
    )(x, mask, wqkv, bqkv, p["wo"], p["bo"])


# ---------------------------------------------------------------------------
# Kernel 2: general (cross-attention) path with separate key / value / query
# ---------------------------------------------------------------------------
def _mha_cross_kernel(q_in_ref, k_in_ref, v_in_ref, mask_ref,
                      wq_ref, bq_ref, wk_ref, bk_ref, wv_ref, bv_ref,
                      wo_ref, bo_ref, o_ref, ctx_slab, *, heads):
    D = q_in_ref.shape[2]
    dh = D // heads
    scale = 1.0 / math.sqrt(dh)

    masked = mask_ref[0] != 0.0                   # hoisted mask compare

    def proj(x_ref_, w_ref_, b_ref_):
        return jnp.dot(x_ref_[0].astype(jnp.bfloat16),
                       w_ref_[...].astype(jnp.bfloat16),
                       preferred_element_type=jnp.float32) + b_ref_[...]

    q = proj(q_in_ref, wq_ref, bq_ref) * scale
    k = proj(k_in_ref, wk_ref, bk_ref)
    v = proj(v_in_ref, wv_ref, bv_ref)

    ctx_hld = _attend(q, k, v, masked, heads, dh)
    out = _project_out(ctx_hld, wo_ref, bo_ref, ctx_slab, heads, dh)
    o_ref[0] = out.astype(o_ref.dtype)


def _mha_cross(key, value, query, mask, p, *, heads):
    B, Lq, D = query.shape
    Lk = key.shape[1]
    mq = mask.shape[1]
    kernel = functools.partial(_mha_cross_kernel, heads=heads)

    def rep(shape):
        n = len(shape)
        return pl.BlockSpec(shape, lambda b, _n=n: (0,) * _n)

    return pl.pallas_call(
        kernel,
        out_shape=jax.ShapeDtypeStruct((B, Lq, D), query.dtype),
        grid=(B,),
        in_specs=[
            pl.BlockSpec((1, Lq, D), lambda b: (b, 0, 0)),    # query
            pl.BlockSpec((1, Lk, D), lambda b: (b, 0, 0)),    # key
            pl.BlockSpec((1, Lk, D), lambda b: (b, 0, 0)),    # value
            pl.BlockSpec((1, mq, Lk), lambda b: (b, 0, 0)),   # mask
            rep((D, D)), rep((1, D)),                         # Wq, bq
            rep((D, D)), rep((1, D)),                         # Wk, bk
            rep((D, D)), rep((1, D)),                         # Wv, bv
            rep((D, D)), rep((1, D)),                         # Wo, bo
        ],
        out_specs=pl.BlockSpec((1, Lq, D), lambda b: (b, 0, 0)),
        scratch_shapes=[pltpu.VMEM((Lq, D), jnp.float32)],
        compiler_params=pltpu.CompilerParams(dimension_semantics=("parallel",)),
    )(query, key, value, mask,
      p["wq"], p["bq"], p["wk"], p["bk"], p["wv"], p["bv"], p["wo"], p["bo"])


# ---------------------------------------------------------------------------
# Public wrapper — mirrors MultiHeadedAttention.forward(key, value, query, mask)
# mask: (B, 1, Lk) or (B, Lq, Lk); nonzero/True => position filled with -1e10
# (same convention as torch masked_fill(mask, -1e10)).
# ---------------------------------------------------------------------------
def multi_headed_attention(key, value, query, params, mask=None, *, heads):
    B, Lk, _ = key.shape
    if mask is None:
        mask = jnp.zeros((B, 1, Lk), jnp.float32)
    mask = mask.astype(jnp.float32)
    if key is query and value is query:
        return _mha_self(query, mask, params, heads=heads)    # fused-QKV path
    return _mha_cross(key, value, query, mask, params, heads=heads)


# ---------------------------------------------------------------------------
# Pure-JAX reference (for a loose numerical sanity check)
# ---------------------------------------------------------------------------
def mha_reference(key, value, query, params, mask, heads):
    B, Lq, D = query.shape
    dh = D // heads

    def shape(x):
        return x.reshape(B, -1, heads, dh).transpose(0, 2, 1, 3)

    q = shape(query @ params["wq"] + params["bq"]) / math.sqrt(dh)
    k = shape(key @ params["wk"] + params["bk"])
    v = shape(value @ params["wv"] + params["bv"])
    scores = jnp.einsum('bhqd,bhkd->bhqk', q, k)
    if mask is not None:
        scores = jnp.where(mask[:, None, :, :] != 0, -10000000000.0, scores)
    attn = jax.nn.softmax(scores, axis=-1)
    ctx = jnp.einsum('bhqk,bhkd->bhqd', attn, v)
    ctx = ctx.transpose(0, 2, 1, 3).reshape(B, Lq, D)
    return ctx @ params["wo"] + params["bo"]


# ---------------------------------------------------------------------------
if __name__ == "__main__":
    heads, d_model = 4, 32
    B, L = 2, 8

    root = jax.random.PRNGKey(0)
    kx, ky, kq, kk, kv, ko = jax.random.split(root, 6)

    s = 0.02
    params = {
        "wq": s * jax.random.normal(kq, (d_model, d_model), jnp.float32),
        "bq": jnp.zeros((1, d_model), jnp.float32),
        "wk": s * jax.random.normal(kk, (d_model, d_model), jnp.float32),
        "bk": jnp.zeros((1, d_model), jnp.float32),
        "wv": s * jax.random.normal(kv, (d_model, d_model), jnp.float32),
        "bv": jnp.zeros((1, d_model), jnp.float32),
        "wo": s * jax.random.normal(ko, (d_model, d_model), jnp.float32),
        "bo": jnp.zeros((1, d_model), jnp.float32),
    }

    x = jax.random.normal(kx, (B, L, d_model), jnp.float32)
    # key-padding mask: mask out (True) the last 2 key positions of batch 1
    pad = jnp.zeros((B, 1, L), jnp.float32).at[1, 0, L - 2:].set(1.0)

    # --- self-attention path (fused QKV kernel) ---------------------------
    out_self = multi_headed_attention(x, x, x, params, mask=pad, heads=heads)
    out_self = jax.block_until_ready(out_self)
    assert out_self.shape == (B, L, d_model) and out_self.dtype == jnp.float32
    ref_self = mha_reference(x, x, x, params, pad, heads)
    assert float(jnp.max(jnp.abs(out_self - ref_self))) < 5e-3

    # --- cross-attention path (distinct key/value vs query) ---------------
    mem = jax.random.normal(ky, (B, L, d_model), jnp.float32)
    out_cross = multi_headed_attention(mem, mem, x, params, mask=pad, heads=heads)
    out_cross = jax.block_until_ready(out_cross)
    assert out_cross.shape == (B, L, d_model)
    ref_cross = mha_reference(mem, mem, x, params, pad, heads)
    assert float(jnp.max(jnp.abs(out_cross - ref_cross))) < 5e-3

    print("KERNEL_OK")
</pallas_src>

<mosaic_0001>
module attributes {stable_mosaic.version = 11 : i64} {
  func.func @_mha_self_kernel(%arg0: i32, %arg1: memref<1x8x32xf32, #tpu.memory_space<vmem>>, %arg2: memref<1x1x8xf32, #tpu.memory_space<vmem>>, %arg3: memref<32x96xf32, #tpu.memory_space<vmem>>, %arg4: memref<1x96xf32, #tpu.memory_space<vmem>>, %arg5: memref<32x32xf32, #tpu.memory_space<vmem>>, %arg6: memref<1x32xf32, #tpu.memory_space<vmem>>, %arg7: memref<1x8x32xf32, #tpu.memory_space<vmem>>, %arg8: memref<8x32xf32, #tpu.memory_space<vmem>>) attributes {dimension_semantics = [#tpu.dimension_semantics<parallel>], iteration_bounds = array<i64: 2>, scalar_prefetch = 0 : i64, scratch_operands = 1 : i64, tpu.core_type = #tpu.core_type<tc>, window_params = [{transform_indices = @transform_0, window_bounds = array<i64: 1, 8, 32>}, {transform_indices = @transform_1, window_bounds = array<i64: 1, 1, 8>}, {pipeline_mode = #tpu.pipeline_mode<synchronous>, transform_indices = @transform_2, window_bounds = array<i64: 32, 96>}, {pipeline_mode = #tpu.pipeline_mode<synchronous>, transform_indices = @transform_3, window_bounds = array<i64: 1, 96>}, {pipeline_mode = #tpu.pipeline_mode<synchronous>, transform_indices = @transform_4, window_bounds = array<i64: 32, 32>}, {pipeline_mode = #tpu.pipeline_mode<synchronous>, transform_indices = @transform_5, window_bounds = array<i64: 1, 32>}, {transform_indices = @transform_6, window_bounds = array<i64: 1, 8, 32>}]} {
    %c0 = arith.constant 0 : index
    %c0_0 = arith.constant 0 : index
    %c0_1 = arith.constant 0 : index
    %0 = vector.load %arg1[%c0, %c0_0, %c0_1] : memref<1x8x32xf32, #tpu.memory_space<vmem>>, vector<1x8x32xf32>
    %1 = vector.shape_cast %0 : vector<1x8x32xf32> to vector<8x32xf32>
    %c0_2 = arith.constant 0 : index
    %c0_3 = arith.constant 0 : index
    %c0_4 = arith.constant 0 : index
    %2 = vector.load %arg2[%c0_2, %c0_3, %c0_4] : memref<1x1x8xf32, #tpu.memory_space<vmem>>, vector<1x1x8xf32>
    %3 = vector.shape_cast %2 : vector<1x1x8xf32> to vector<1x8xf32>
    %cst = arith.constant 0.000000e+00 : f32
    %4 = vector.broadcast %cst : f32 to vector<1x8xf32>
    %5 = arith.cmpf one, %3, %4 : vector<1x8xf32>
    %6 = arith.truncf %1 : vector<8x32xf32> to vector<8x32xbf16>
    %c0_5 = arith.constant 0 : index
    %c0_6 = arith.constant 0 : index
    %7 = vector.load %arg3[%c0_5, %c0_6] : memref<32x96xf32, #tpu.memory_space<vmem>>, vector<32x96xf32>
    %8 = arith.truncf %7 : vector<32x96xf32> to vector<32x96xbf16>
    %cst_7 = arith.constant dense<0.000000e+00> : vector<8x96xf32>
    %9 = tpu.matmul %6, %8, %cst_7 {dimension_numbers = #tpu.dot_dimension_numbers<[1], [0], [0], [1], [0, 0, 1, 1], [], []>} : vector<8x32xbf16>, vector<32x96xbf16>, vector<8x96xf32> -> vector<8x96xf32>
    %c0_8 = arith.constant 0 : index
    %c0_9 = arith.constant 0 : index
    %10 = vector.load %arg4[%c0_8, %c0_9] : memref<1x96xf32, #tpu.memory_space<vmem>>, vector<1x96xf32>
    %11 = vector.broadcast %10 : vector<1x96xf32> to vector<8x96xf32>
    %12 = arith.addf %9, %11 : vector<8x96xf32>
    %13 = vector.extract_strided_slice %12 {offsets = [0, 0], sizes = [8, 32], strides = [1, 1]} : vector<8x96xf32> to vector<8x32xf32>
    %cst_10 = arith.constant 0.353553385 : f32
    %14 = vector.broadcast %cst_10 : f32 to vector<8x32xf32>
    %15 = arith.mulf %13, %14 : vector<8x32xf32>
    %16 = vector.extract_strided_slice %12 {offsets = [0, 32], sizes = [8, 32], strides = [1, 1]} : vector<8x96xf32> to vector<8x32xf32>
    %17 = vector.extract_strided_slice %12 {offsets = [0, 64], sizes = [8, 32], strides = [1, 1]} : vector<8x96xf32> to vector<8x32xf32>
    %18 = vector.extract_strided_slice %15 {offsets = [0, 0], sizes = [8, 8], strides = [1, 1]} : vector<8x32xf32> to vector<8x8xf32>
    %19 = vector.extract_strided_slice %15 {offsets = [0, 8], sizes = [8, 8], strides = [1, 1]} : vector<8x32xf32> to vector<8x8xf32>
    %20 = vector.extract_strided_slice %15 {offsets = [0, 16], sizes = [8, 8], strides = [1, 1]} : vector<8x32xf32> to vector<8x8xf32>
    %21 = vector.extract_strided_slice %15 {offsets = [0, 24], sizes = [8, 8], strides = [1, 1]} : vector<8x32xf32> to vector<8x8xf32>
    %22 = vector.shape_cast %18 : vector<8x8xf32> to vector<1x8x8xf32>
    %23 = vector.shape_cast %19 : vector<8x8xf32> to vector<1x8x8xf32>
    %24 = vector.shape_cast %20 : vector<8x8xf32> to vector<1x8x8xf32>
    %25 = vector.shape_cast %21 : vector<8x8xf32> to vector<1x8x8xf32>
    %26 = tpu.concatenate %22, %23, %24, %25 in 0 : vector<1x8x8xf32>, vector<1x8x8xf32>, vector<1x8x8xf32>, vector<1x8x8xf32> -> vector<4x8x8xf32>
    %27 = arith.truncf %26 : vector<4x8x8xf32> to vector<4x8x8xbf16>
    %28 = vector.extract_strided_slice %16 {offsets = [0, 0], sizes = [8, 8], strides = [1, 1]} : vector<8x32xf32> to vector<8x8xf32>
    %29 = vector.extract_strided_slice %16 {offsets = [0, 8], sizes = [8, 8], strides = [1, 1]} : vector<8x32xf32> to vector<8x8xf32>
    %30 = vector.extract_strided_slice %16 {offsets = [0, 16], sizes = [8, 8], strides = [1, 1]} : vector<8x32xf32> to vector<8x8xf32>
    %31 = vector.extract_strided_slice %16 {offsets = [0, 24], sizes = [8, 8], strides = [1, 1]} : vector<8x32xf32> to vector<8x8xf32>
    %32 = vector.shape_cast %28 : vector<8x8xf32> to vector<1x8x8xf32>
    %33 = vector.shape_cast %29 : vector<8x8xf32> to vector<1x8x8xf32>
    %34 = vector.shape_cast %30 : vector<8x8xf32> to vector<1x8x8xf32>
    %35 = vector.shape_cast %31 : vector<8x8xf32> to vector<1x8x8xf32>
    %36 = tpu.concatenate %32, %33, %34, %35 in 0 : vector<1x8x8xf32>, vector<1x8x8xf32>, vector<1x8x8xf32>, vector<1x8x8xf32> -> vector<4x8x8xf32>
    %37 = arith.truncf %36 : vector<4x8x8xf32> to vector<4x8x8xbf16>
    %38 = vector.extract_strided_slice %17 {offsets = [0, 0], sizes = [8, 8], strides = [1, 1]} : vector<8x32xf32> to vector<8x8xf32>
    %39 = vector.extract_strided_slice %17 {offsets = [0, 8], sizes = [8, 8], strides = [1, 1]} : vector<8x32xf32> to vector<8x8xf32>
    %40 = vector.extract_strided_slice %17 {offsets = [0, 16], sizes = [8, 8], strides = [1, 1]} : vector<8x32xf32> to vector<8x8xf32>
    %41 = vector.extract_strided_slice %17 {offsets = [0, 24], sizes = [8, 8], strides = [1, 1]} : vector<8x32xf32> to vector<8x8xf32>
    %42 = vector.shape_cast %38 : vector<8x8xf32> to vector<1x8x8xf32>
    %43 = vector.shape_cast %39 : vector<8x8xf32> to vector<1x8x8xf32>
    %44 = vector.shape_cast %40 : vector<8x8xf32> to vector<1x8x8xf32>
    %45 = vector.shape_cast %41 : vector<8x8xf32> to vector<1x8x8xf32>
    %46 = tpu.concatenate %42, %43, %44, %45 in 0 : vector<1x8x8xf32>, vector<1x8x8xf32>, vector<1x8x8xf32>, vector<1x8x8xf32> -> vector<4x8x8xf32>
    %47 = arith.truncf %46 : vector<4x8x8xf32> to vector<4x8x8xbf16>
    "tpu.trace_start"() <{level = 10 : i32, message = "hqd,hkd->hqk"}> : () -> ()
    %cst_11 = arith.constant dense<0.000000e+00> : vector<4x8x8xf32>
    %48 = tpu.matmul %27, %37, %cst_11 {dimension_numbers = #tpu.dot_dimension_numbers<[2], [2], [1], [1], [0, 0, 0, 1, 1, 1], [0], [0]>} : vector<4x8x8xbf16>, vector<4x8x8xbf16>, vector<4x8x8xf32> -> vector<4x8x8xf32>
    "tpu.trace_stop"() : () -> ()
    %49 = vector.shape_cast %5 : vector<1x8xi1> to vector<1x1x8xi1>
    %cst_12 = arith.constant -1.000000e+10 : f32
    %50 = vector.shape_cast %49 : vector<1x1x8xi1> to vector<1x1x8xi1>
    %51 = vector.broadcast %50 : vector<1x1x8xi1> to vector<4x8x8xi1>
    %52 = vector.broadcast %cst_12 : f32 to vector<4x8x8xf32>
    %53 = arith.select %51, %52, %48 : vector<4x8x8xi1>, vector<4x8x8xf32>
    %cst_13 = arith.constant dense<0xFF800000> : vector<4x8xf32>
    %54 = vector.multi_reduction <maximumf>, %53, %cst_13 [2] : vector<4x8x8xf32> to vector<4x8xf32>
    %55 = vector.shape_cast %54 : vector<4x8xf32> to vector<4x8x1xf32>
    %56 = vector.broadcast %55 : vector<4x8x1xf32> to vector<4x8x8xf32>
    %57 = arith.subf %53, %56 : vector<4x8x8xf32>
    %58 = math.exp %57 : vector<4x8x8xf32>
    %cst_14 = arith.constant dense<0.000000e+00> : vector<4x8xf32>
    %59 = vector.multi_reduction <add>, %58, %cst_14 [2] : vector<4x8x8xf32> to vector<4x8xf32>
    %60 = vector.shape_cast %59 : vector<4x8xf32> to vector<4x8x1xf32>
    %61 = tpu.reciprocal %60 {approx = true} : vector<4x8x1xf32> -> vector<4x8x1xf32>
    %62 = vector.broadcast %61 : vector<4x8x1xf32> to vector<4x8x8xf32>
    %63 = arith.mulf %58, %62 : vector<4x8x8xf32>
    %64 = arith.truncf %63 : vector<4x8x8xf32> to vector<4x8x8xbf16>
    "tpu.trace_start"() <{level = 10 : i32, message = "hqk,hkd->hqd"}> : () -> ()
    %cst_15 = arith.constant dense<0.000000e+00> : vector<4x8x8xf32>
    %65 = tpu.matmul %64, %47, %cst_15 {dimension_numbers = #tpu.dot_dimension_numbers<[2], [1], [1], [2], [0, 0, 0, 1, 1, 2], [0], [0]>} : vector<4x8x8xbf16>, vector<4x8x8xbf16>, vector<4x8x8xf32> -> vector<4x8x8xf32>
    "tpu.trace_stop"() : () -> ()
    %66 = vector.extract_strided_slice %65 {offsets = [0, 0, 0], sizes = [1, 8, 8], strides = [1, 1, 1]} : vector<4x8x8xf32> to vector<1x8x8xf32>
    %67 = vector.shape_cast %66 : vector<1x8x8xf32> to vector<8x8xf32>
    %c0_16 = arith.constant 0 : index
    %c0_17 = arith.constant 0 : index
    %68 = vector.load %arg8[%c0_16, %c0_17] : memref<8x32xf32, #tpu.memory_space<vmem>>, vector<8x8xf32>
    tpu.vector_store %arg8[%c0_16, %c0_17], %67 {strides = array<i32>} : memref<8x32xf32, #tpu.memory_space<vmem>>, vector<8x8xf32>,
    %69 = vector.extract_strided_slice %65 {offsets = [1, 0, 0], sizes = [1, 8, 8], strides = [1, 1, 1]} : vector<4x8x8xf32> to vector<1x8x8xf32>
    %70 = vector.shape_cast %69 : vector<1x8x8xf32> to vector<8x8xf32>
    %c0_18 = arith.constant 0 : index
    %c8 = arith.constant 8 : index
    %71 = vector.load %arg8[%c0_18, %c8] : memref<8x32xf32, #tpu.memory_space<vmem>>, vector<8x8xf32>
    tpu.vector_store %arg8[%c0_18, %c8], %70 {strides = array<i32>} : memref<8x32xf32, #tpu.memory_space<vmem>>, vector<8x8xf32>,
    %72 = vector.extract_strided_slice %65 {offsets = [2, 0, 0], sizes = [1, 8, 8], strides = [1, 1, 1]} : vector<4x8x8xf32> to vector<1x8x8xf32>
    %73 = vector.shape_cast %72 : vector<1x8x8xf32> to vector<8x8xf32>
    %c0_19 = arith.constant 0 : index
    %c16 = arith.constant 16 : index
    %74 = vector.load %arg8[%c0_19, %c16] : memref<8x32xf32, #tpu.memory_space<vmem>>, vector<8x8xf32>
    tpu.vector_store %arg8[%c0_19, %c16], %73 {strides = array<i32>} : memref<8x32xf32, #tpu.memory_space<vmem>>, vector<8x8xf32>,
    %75 = vector.extract_strided_slice %65 {offsets = [3, 0, 0], sizes = [1, 8, 8], strides = [1, 1, 1]} : vector<4x8x8xf32> to vector<1x8x8xf32>
    %76 = vector.shape_cast %75 : vector<1x8x8xf32> to vector<8x8xf32>
    %c0_20 = arith.constant 0 : index
    %c24 = arith.constant 24 : index
    %77 = vector.load %arg8[%c0_20, %c24] : memref<8x32xf32, #tpu.memory_space<vmem>>, vector<8x8xf32>
    tpu.vector_store %arg8[%c0_20, %c24], %76 {strides = array<i32>} : memref<8x32xf32, #tpu.memory_space<vmem>>, vector<8x8xf32>,
    %c0_21 = arith.constant 0 : index
    %c0_22 = arith.constant 0 : index
    %78 = vector.load %arg8[%c0_21, %c0_22] : memref<8x32xf32, #tpu.memory_space<vmem>>, vector<8x32xf32>
    %79 = arith.truncf %78 : vector<8x32xf32> to vector<8x32xbf16>
    %c0_23 = arith.constant 0 : index
    %c0_24 = arith.constant 0 : index
    %80 = vector.load %arg5[%c0_23, %c0_24] : memref<32x32xf32, #tpu.memory_space<vmem>>, vector<32x32xf32>
    %81 = arith.truncf %80 : vector<32x32xf32> to vector<32x32xbf16>
    %cst_25 = arith.constant dense<0.000000e+00> : vector<8x32xf32>
    %82 = tpu.matmul %79, %81, %cst_25 {dimension_numbers = #tpu.dot_dimension_numbers<[1], [0], [0], [1], [0, 0, 1, 1], [], []>} : vector<8x32xbf16>, vector<32x32xbf16>, vector<8x32xf32> -> vector<8x32xf32>
    %c0_26 = arith.constant 0 : index
    %c0_27 = arith.constant 0 : index
    %83 = vector.load %arg6[%c0_26, %c0_27] : memref<1x32xf32, #tpu.memory_space<vmem>>, vector<1x32xf32>
    %84 = vector.broadcast %83 : vector<1x32xf32> to vector<8x32xf32>
    %85 = arith.addf %82, %84 : vector<8x32xf32>
    %c0_28 = arith.constant 0 : index
    %c0_29 = arith.constant 0 : index
    %c0_30 = arith.constant 0 : index
    %86 = vector.load %arg7[%c0_28, %c0_29, %c0_30] : memref<1x8x32xf32, #tpu.memory_space<vmem>>, vector<1x8x32xf32>
    %87 = vector.shape_cast %86 : vector<1x8x32xf32> to vector<8x32xf32>
    %88 = vector.shape_cast %85 : vector<8x32xf32> to vector<1x8x32xf32>
    tpu.vector_store %arg7[%c0_28, %c0_29, %c0_30], %88 {strides = array<i32>} : memref<1x8x32xf32, #tpu.memory_space<vmem>>, vector<1x8x32xf32>,
    return
  }
  func.func @transform_0(%arg0: i32) -> (i32, i32, i32) {
    %c0_i32 = arith.constant 0 : i32
    %c0_i32_0 = arith.constant 0 : i32
    %c0_i32_1 = arith.constant 0 : i32
    return %arg0, %c0_i32, %c0_i32_0 : i32, i32, i32
  }
  func.func @transform_1(%arg0: i32) -> (i32, i32, i32) {
    %c0_i32 = arith.constant 0 : i32
    %c0_i32_0 = arith.constant 0 : i32
    %c0_i32_1 = arith.constant 0 : i32
    return %arg0, %c0_i32, %c0_i32_0 : i32, i32, i32
  }
  func.func @transform_2(%arg0: i32) -> (i32, i32) {
    %c0_i32 = arith.constant 0 : i32
    %c0_i32_0 = arith.constant 0 : i32
    %c0_i32_1 = arith.constant 0 : i32
    return %c0_i32, %c0_i32_0 : i32, i32
  }
  func.func @transform_3(%arg0: i32) -> (i32, i32) {
    %c0_i32 = arith.constant 0 : i32
    %c0_i32_0 = arith.constant 0 : i32
    %c0_i32_1 = arith.constant 0 : i32
    return %c0_i32, %c0_i32_0 : i32, i32
  }
  func.func @transform_4(%arg0: i32) -> (i32, i32) {
    %c0_i32 = arith.constant 0 : i32
    %c0_i32_0 = arith.constant 0 : i32
    %c0_i32_1 = arith.constant 0 : i32
    return %c0_i32, %c0_i32_0 : i32, i32
  }
  func.func @transform_5(%arg0: i32) -> (i32, i32) {
    %c0_i32 = arith.constant 0 : i32
    %c0_i32_0 = arith.constant 0 : i32
    %c0_i32_1 = arith.constant 0 : i32
    return %c0_i32, %c0_i32_0 : i32, i32
  }
  func.func @transform_6(%arg0: i32) -> (i32, i32, i32) {
    %c0_i32 = arith.constant 0 : i32
    %c0_i32_0 = arith.constant 0 : i32
    %c0_i32_1 = arith.constant 0 : i32
    return %arg0, %c0_i32, %c0_i32_0 : i32, i32, i32
  }
}

</mosaic_0001>

<llo_original>
// kernel: tpu_custom_call.1
$region0: #{tpu_custom_call.1}
  #allocation0 [shape = 'u32[]', space=smem, size = 0x4, offset = 0x4, fixed_abs, tag = 'smem constant byte address 0x4 - core index']
  #allocation1 [shape = 'u32[144,128]{1,0:T(1,128)}', space=vmem, size = 0x12000, scoped, tag = 'internal scratch']
  #allocation2 [shape = 'f32[8,32]{1,0:T(8,128)}', space=vmem, size = 0x1000, scoped, tag = 'scratch operand']
  %s0 = inlined_call_operand.hbm [shape: f32[2,8,32], index: 0, kind: input, shape index: {}]
  %s1 = inlined_call_operand.vmem [shape: f32[2,1,8], index: 1, kind: input, shape index: {}]
  %s2 = inlined_call_operand.hbm [shape: f32[32,96], index: 2, kind: input, shape index: {}]
  %s3 = inlined_call_operand.vmem [shape: f32[1,96], index: 3, kind: input, shape index: {}]
  %s4 = inlined_call_operand.hbm [shape: f32[32,32], index: 4, kind: input, shape index: {}]
  %s5 = inlined_call_operand.vmem [shape: f32[1,32], index: 5, kind: input, shape index: {}]
  %s6 = inlined_call_operand.hbm [shape: f32[2,8,32], index: 6, kind: output, shape index: {}]
  %s7 = sld [smem:[#allocation0]]
  $region69: #{tpu_custom_call.1} parent=0
    _
  %s9 = ssub.s32 1, %s7
  %s10 = scalar_select 0, %s9, %s7
  $region1: #{tpu_custom_call.1} parent=0
    #allocation3 [shape = 'u8[8192]{0}', space=vmem, size = 0x2000, scoped, tag = 'input window, operand 0']
    #allocation4 [shape = 's32[2]{0}', space=sflag, size = 0x8, scoped, tag = 'scoped memory for tpu_custom_call.1']
    #allocation5 [shape = 's32[2]{0}', space=sflag, size = 0x8, scoped, tag = 'scoped memory for tpu_custom_call.1']
    #allocation6 [shape = 'u8[16384]{0}', space=vmem, size = 0x4000, scoped, tag = 'input window, operand 2, single buffered']
    #allocation7 [shape = 's32[1]{0}', space=sflag, size = 0x4, scoped, tag = 'scoped memory for tpu_custom_call.1']
    #allocation8 [shape = 'u8[16384]{0}', space=vmem, size = 0x4000, scoped, tag = 'input window, operand 4, single buffered']
    #allocation9 [shape = 'u8[8192]{0}', space=vmem, size = 0x2000, scoped, tag = 'output window, operand 0']
    %11 = vsyncpa [#allocation4], 0
    %s12 = scalar_lea.sflag [#allocation4], 1
    %13 = vsyncpa %s12, 0
    %14 = vsyncpa [#allocation7], 0
    %15 = vsyncpa [#allocation5], 0
    %s16 = scalar_lea.sflag [#allocation5], 1
    %17 = vsyncpa %s16, 0
    loop: start=0, step=1, limit=4
    $region2: #{tpu_custom_call.1} parent=1 // loop_pre_header
      _
    $region3: #{tpu_custom_call.1} parent=1 // loop_header
      %s19 = sphi 0, %s23
      %p20 = scmp.ge.s32.totalorder %s19, 4
      %s29 = sphi 0, %s31
      %s32 = sphi 0, %s29
      %s33 = sphi 0, %s32
      %s49 = sphi 0, %s33
      %s55 = sphi 0, %s57
      %s58 = sphi 0, %s55
      %s59 = sphi 0, %s58
      %s75 = sphi 0, %s59
      %s79 = sphi 0, %s79
      %s81 = sphi 0, %s79
      %s82 = sphi 0, %s81
      %s96 = sphi 0, %s82
      %s100 = sphi 0, %s100
      %s102 = sphi 0, %s100
      %s103 = sphi 0, %s102
      %s117 = sphi 0, %s103
      %s121 = sphi 0, %s121
      %s123 = sphi 0, %s121
      %s124 = sphi 0, %s123
      %s138 = sphi 0, %s124
      %s142 = sphi 0, %s142
      %s144 = sphi 0, %s142
      %s145 = sphi 0, %s144
      %s159 = sphi 0, %s145
      %s165 = sphi 0, %s167
      %s168 = sphi 0, %s165
      %s169 = sphi 0, %s168
      %s185 = sphi 0, %s169
    $region4: #{tpu_custom_call.1} parent=1 // loop_header_branch
      %22 = sbr.rel (%p20) target = $region8
    $region5: #{tpu_custom_call.1} parent=1 // loop_body
      %s24 = ssub.s32 %s19, 1
      %s25 = ssub.s32 %s19, 2
      %s26 = sadd.s32 %s19, 1
      %s27 = ssub.s32 %s19, %s26
      %p28 = scmp.eq.s32.totalorder %s27, 0
      %s30 = sadd.s32 %s29, 1
      %s31 = scalar_select %p28, %s29, %s30
      %p34 = pneg %p28
      %p35 = scmp.eq.s32.totalorder %s19, 1
      %p36 = por %p34, %p35
      %p37 = scmp.ne.s32.totalorder %s29, %s32
      %p38 = scmp.eq.s32.totalorder %s19, 0
      %p39 = por %p37, %p38
      %p40 = scmp.ne.s32.totalorder %s29, %s32
      %p41 = scmp.eq.s32.totalorder %s24, 1
      %p42 = por %p40, %p41
      %p43 = scmp.ne.s32.totalorder %s32, %s33
      %p44 = scmp.eq.s32.totalorder %s24, 0
      %p45 = por %p43, %p44
      %p46 = scmp.ne.s32.totalorder %s32, %s33
      %p47 = scmp.eq.s32.totalorder %s25, 1
      %p48 = por %p46, %p47
      %p50 = scmp.ne.s32.totalorder %s33, %s49
      %p51 = scmp.eq.s32.totalorder %s25, 0
      %p52 = por %p50, %p51
      %s53 = ssub.s32 %s19, %s26
      %p54 = scmp.eq.s32.totalorder %s53, 0
      %s56 = sadd.s32 %s55, 1
      %s57 = scalar_select %p54, %s55, %s56
      %p60 = pneg %p54
      %p61 = scmp.eq.s32.totalorder %s19, 1
      %p62 = por %p60, %p61
      %p63 = scmp.ne.s32.totalorder %s55, %s58
      %p64 = scmp.eq.s32.totalorder %s19, 0
      %p65 = por %p63, %p64
      %p66 = scmp.ne.s32.totalorder %s55, %s58
      %p67 = scmp.eq.s32.totalorder %s24, 1
      %p68 = por %p66, %p67
      %p69 = scmp.ne.s32.totalorder %s58, %s59
      %p70 = scmp.eq.s32.totalorder %s24, 0
      %p71 = por %p69, %p70
      %p72 = scmp.ne.s32.totalorder %s58, %s59
      %p73 = scmp.eq.s32.totalorder %s25, 1
      %p74 = por %p72, %p73
      %p76 = scmp.ne.s32.totalorder %s59, %s75
      %p77 = scmp.eq.s32.totalorder %s25, 0
      %p78 = por %p76, %p77
      %s80 = sadd.s32 %s79, 1
      %p83 = scmp.eq.s32.totalorder %s19, 1
      %p84 = scmp.ne.s32.totalorder %s79, %s81
      %p85 = scmp.eq.s32.totalorder %s19, 0
      %p86 = por %p84, %p85
      %p87 = scmp.ne.s32.totalorder %s79, %s81
      %p88 = scmp.eq.s32.totalorder %s24, 1
      %p89 = por %p87, %p88
      %p90 = scmp.ne.s32.totalorder %s81, %s82
      %p91 = scmp.eq.s32.totalorder %s24, 0
      %p92 = por %p90, %p91
      %p93 = scmp.ne.s32.totalorder %s81, %s82
      %p94 = scmp.eq.s32.totalorder %s25, 1
      %p95 = por %p93, %p94
      %p97 = scmp.ne.s32.totalorder %s82, %s96
      %p98 = scmp.eq.s32.totalorder %s25, 0
      %p99 = por %p97, %p98
      %s101 = sadd.s32 %s100, 1
      %p104 = scmp.eq.s32.totalorder %s19, 1
      %p105 = scmp.ne.s32.totalorder %s100, %s102
      %p106 = scmp.eq.s32.totalorder %s19, 0
      %p107 = por %p105, %p106
      %p108 = scmp.ne.s32.totalorder %s100, %s102
      %p109 = scmp.eq.s32.totalorder %s24, 1
      %p110 = por %p108, %p109
      %p111 = scmp.ne.s32.totalorder %s102, %s103
      %p112 = scmp.eq.s32.totalorder %s24, 0
      %p113 = por %p111, %p112
      %p114 = scmp.ne.s32.totalorder %s102, %s103
      %p115 = scmp.eq.s32.totalorder %s25, 1
      %p116 = por %p114, %p115
      %p118 = scmp.ne.s32.totalorder %s103, %s117
      %p119 = scmp.eq.s32.totalorder %s25, 0
      %p120 = por %p118, %p119
      %s122 = sadd.s32 %s121, 1
      %p125 = scmp.eq.s32.totalorder %s19, 1
      %p126 = scmp.ne.s32.totalorder %s121, %s123
      %p127 = scmp.eq.s32.totalorder %s19, 0
      %p128 = por %p126, %p127
      %p129 = scmp.ne.s32.totalorder %s121, %s123
      %p130 = scmp.eq.s32.totalorder %s24, 1
      %p131 = por %p129, %p130
      %p132 = scmp.ne.s32.totalorder %s123, %s124
      %p133 = scmp.eq.s32.totalorder %s24, 0
      %p134 = por %p132, %p133
      %p135 = scmp.ne.s32.totalorder %s123, %s124
      %p136 = scmp.eq.s32.totalorder %s25, 1
      %p137 = por %p135, %p136
      %p139 = scmp.ne.s32.totalorder %s124, %s138
      %p140 = scmp.eq.s32.totalorder %s25, 0
      %p141 = por %p139, %p140
      %s143 = sadd.s32 %s142, 1
      %p146 = scmp.eq.s32.totalorder %s19, 1
      %p147 = scmp.ne.s32.totalorder %s142, %s144
      %p148 = scmp.eq.s32.totalorder %s19, 0
      %p149 = por %p147, %p148
      %p150 = scmp.ne.s32.totalorder %s142, %s144
      %p151 = scmp.eq.s32.totalorder %s24, 1
      %p152 = por %p150, %p151
      %p153 = scmp.ne.s32.totalorder %s144, %s145
      %p154 = scmp.eq.s32.totalorder %s24, 0
      %p155 = por %p153, %p154
      %p156 = scmp.ne.s32.totalorder %s144, %s145
      %p157 = scmp.eq.s32.totalorder %s25, 1
      %p158 = por %p156, %p157
      %p160 = scmp.ne.s32.totalorder %s145, %s159
      %p161 = scmp.eq.s32.totalorder %s25, 0
      %p162 = por %p160, %p161
      %s163 = ssub.s32 %s19, %s26
      %p164 = scmp.eq.s32.totalorder %s163, 0
      %s166 = sadd.s32 %s165, 1
      %s167 = scalar_select %p164, %s165, %s166
      %p170 = pneg %p164
      %p171 = scmp.eq.s32.totalorder %s19, 1
      %p172 = por %p170, %p171
      %p173 = scmp.ne.s32.totalorder %s165, %s168
      %p174 = scmp.eq.s32.totalorder %s19, 0
      %p175 = por %p173, %p174
      %p176 = scmp.ne.s32.totalorder %s165, %s168
      %p177 = scmp.eq.s32.totalorder %s24, 1
      %p178 = por %p176, %p177
      %p179 = scmp.ne.s32.totalorder %s168, %s169
      %p180 = scmp.eq.s32.totalorder %s24, 0
      %p181 = por %p179, %p180
      %p182 = scmp.ne.s32.totalorder %s168, %s169
      %p183 = scmp.eq.s32.totalorder %s25, 1
      %p184 = por %p182, %p183
      %p186 = scmp.ne.s32.totalorder %s169, %s185
      %p187 = scmp.eq.s32.totalorder %s25, 0
      %p188 = por %p186, %p187
      %p189 = scmp.le.s32.totalorder 1, %s19
      %p190 = scmp.lt.s32.totalorder %s19, 3
      %p191 = pnand %p189, %p190
      %p192 = pneg %p191
      // Predicated region
      $region9: #{tpu_custom_call.1} parent=5 // pred_check
        _
      $region10: #{tpu_custom_call.1} parent=5 // pred_check_branch
        %194 = sbr.rel (%p191) target = $region12
      $region11: #{tpu_custom_call.1} parent=5 // pred_region
        %s195 = ssub.s32 %s19, 1
        // Predicated region
        $region13: #{tpu_custom_call.1} parent=11 // pred_check
          %p196 = pneg %p92
        $region14: #{tpu_custom_call.1} parent=11 // pred_check_branch
          %198 = sbr.rel (%p196) target = $region16
        $region15: #{tpu_custom_call.1} parent=11 // pred_region
          %s200 = ssub.s32 512, 512
          %201 = vsyncadd [#allocation7], %s200
          %s202 = sshll.u32 [#allocation6], 4
          %s203 = int_to_ptr.vmem [resolvable:$true] %s202
          %208 = dma.hbm_to_vmem [thread:$0]  %s2, 512, %s203, [#allocation7], 128, 128, 8
        $region16: #{tpu_custom_call.1} parent=11 // pred_fallthru
          _
        // Predicated region
        $region17: #{tpu_custom_call.1} parent=11 // pred_check
          %p209 = pneg %p113
        $region18: #{tpu_custom_call.1} parent=11 // pred_check_branch
          %211 = sbr.rel (%p209) target = $region20
        $region19: #{tpu_custom_call.1} parent=11 // pred_region
          _
        $region20: #{tpu_custom_call.1} parent=11 // pred_fallthru
          _
        // Predicated region
        $region21: #{tpu_custom_call.1} parent=11 // pred_check
          %p212 = pneg %p134
        $region22: #{tpu_custom_call.1} parent=11 // pred_check_branch
          %214 = sbr.rel (%p212) target = $region24
        $region23: #{tpu_custom_call.1} parent=11 // pred_region
          %s216 = ssub.s32 512, 512
          %217 = vsyncadd [#allocation7], %s216
          %s218 = sshll.u32 [#allocation8], 4
          %s219 = int_to_ptr.vmem [resolvable:$true] %s218
          %224 = dma.hbm_to_vmem [thread:$0]  %s4, 512, %s219, [#allocation7], 128, 128, 8
        $region24: #{tpu_custom_call.1} parent=11 // pred_fallthru
          _
        // Predicated region
        $region25: #{tpu_custom_call.1} parent=11 // pred_check
          %p225 = pneg %p155
        $region26: #{tpu_custom_call.1} parent=11 // pred_check_branch
          %227 = sbr.rel (%p225) target = $region28
        $region27: #{tpu_custom_call.1} parent=11 // pred_region
          _
        $region28: #{tpu_custom_call.1} parent=11 // pred_fallthru
          _
      $region12: #{tpu_custom_call.1} parent=5 // pred_fallthru
        _
      %p228 = scmp.lt.s32.totalorder %s19, 2
      // Predicated region
      $region29: #{tpu_custom_call.1} parent=5 // pred_check
        %p229 = pneg %p228
      $region30: #{tpu_custom_call.1} parent=5 // pred_check_branch
        %231 = sbr.rel (%p229) target = $region32
      $region31: #{tpu_custom_call.1} parent=5 // pred_region
        // Predicated region
        $region33: #{tpu_custom_call.1} parent=31 // pred_check
          %p232 = pneg %p39
        $region34: #{tpu_custom_call.1} parent=31 // pred_check_branch
          %234 = sbr.rel (%p232) target = $region36
        $region35: #{tpu_custom_call.1} parent=31 // pred_region
          %s235 = sand.u32 %s29, 1
          %s236 = scalar_lea.sflag [#allocation4], %s235
          %s237 = sand.u32 %s29, 1
          %s238 = smul.addr %s237, 8
          %s239 = scalar_lea.vmem [#allocation3], %s238
          %s241 = ssub.s32 128, 128
          %242 = vsyncadd %s236, %s241
          %s243 = smul.addr %s19, 128
          %s244 = scalar_lea.hbm %s0, %s243
          %s246 = sshll.u32 %s239, 4
          %s247 = int_to_ptr.vmem [resolvable:$true] %s246
          %249 = dma.hbm_to_vmem [thread:$0]  %s244, 128, %s247, %s236
        $region36: #{tpu_custom_call.1} parent=31 // pred_fallthru
          _
        // Predicated region
        $region37: #{tpu_custom_call.1} parent=31 // pred_check
          %p250 = pneg %p65
        $region38: #{tpu_custom_call.1} parent=31 // pred_check_branch
          %252 = sbr.rel (%p250) target = $region40
        $region39: #{tpu_custom_call.1} parent=31 // pred_region
          %p253 = scmp.lt.s32.totalorder %s19, 1
          %s254 = scalar_select %p253, %s19, 1
          %s255 = scalar_lea.vmem %s1, %s254
        $region40: #{tpu_custom_call.1} parent=31 // pred_fallthru
          _
      $region32: #{tpu_custom_call.1} parent=5 // pred_fallthru
        _
      %p256 = scmp.le.s32.totalorder 1, %s19
      %p257 = scmp.lt.s32.totalorder %s19, 3
      %p258 = pnand %p256, %p257
      %p259 = pneg %p258
      // Predicated region
      $region41: #{tpu_custom_call.1} parent=5 // pred_check
        _
      $region42: #{tpu_custom_call.1} parent=5 // pred_check_branch
        %261 = sbr.rel (%p258) target = $region44
      $region43: #{tpu_custom_call.1} parent=5 // pred_region
        %s262 = ssub.s32 %s19, 1
        %s263 = sand.u32 %s32, 1
        %s264 = scalar_lea.sflag [#allocation4], %s263
        %s265 = sand.u32 %s32, 1
        %s266 = smul.addr %s265, 8
        %s267 = scalar_lea.vmem [#allocation3], %s266
        // Predicated region
        $region45: #{tpu_custom_call.1} parent=43 // pred_check
          %p268 = pneg %p45
        $region46: #{tpu_custom_call.1} parent=43 // pred_check_branch
          %270 = sbr.rel (%p268) target = $region48
        $region47: #{tpu_custom_call.1} parent=43 // pred_region
          %271 = dma.done %s264, 128
        $region48: #{tpu_custom_call.1} parent=43 // pred_fallthru
          _
        // Predicated region
        $region49: #{tpu_custom_call.1} parent=43 // pred_check
          %p272 = pneg %p92
        $region50: #{tpu_custom_call.1} parent=43 // pred_check_branch
          %274 = sbr.rel (%p272) target = $region52
        $region51: #{tpu_custom_call.1} parent=43 // pred_region
          %275 = dma.done [#allocation7], 512
        $region52: #{tpu_custom_call.1} parent=43 // pred_fallthru
          _
        // Predicated region
        $region53: #{tpu_custom_call.1} parent=43 // pred_check
          %p276 = pneg %p134
        $region54: #{tpu_custom_call.1} parent=43 // pred_check_branch
          %278 = sbr.rel (%p276) target = $region56
        $region55: #{tpu_custom_call.1} parent=43 // pred_region
          %279 = dma.done [#allocation7], 512
        $region56: #{tpu_custom_call.1} parent=43 // pred_fallthru
          _
        %s280 = sand.u32 %s32, 1
        %s281 = scalar_lea.sflag [#allocation4], %s280
        %s282 = sand.u32 %s32, 1
        %s283 = smul.addr %s282, 8
        %s284 = scalar_lea.vmem [#allocation3], %s283
        %p285 = pneg %p45
        %p286 = pneg %p42
        %p287 = scmp.lt.s32.totalorder %s24, 1
        %s288 = scalar_select %p287, %s24, 1
        %s289 = scalar_lea.vmem %s1, %s288
        %p290 = pneg %p71
        %p291 = pneg %p68
        %p292 = pneg %p92
        %p293 = pneg %p89
        %p294 = pneg %p113
        %p295 = pneg %p110
        %p296 = pneg %p134
        %p297 = pneg %p131
        %p298 = pneg %p155
        %p299 = pneg %p152
        %p300 = pneg %p181
        %p301 = pneg %p178
        %s302 = sand.u32 %s168, 1
        %s303 = scalar_lea.sflag [#allocation5], %s302
        %s304 = sand.u32 %s168, 1
        %s305 = smul.addr %s304, 8
        %s306 = scalar_lea.vmem [#allocation9], %s305
        %p307 = scmp.lt.s32.totalorder %s24, 1
        %s308 = scalar_select %p307, %s24, 1
        %s309 = scalar_lea.vmem %s1, %s308
        %v311 = vld [vmem:[%s267] sm:$0xff]
        %v312 = vld [vmem:[%s309] sm:$0x1]
        %vm313 = vcmp.ne.f32.partialorder %v312, 0.0
        %v314 = vpack.c.bf16 %v311, %v311
        %v315 = vld [vmem:[#allocation6] sm:$0xff]
        %v316 = vld [vmem:[#allocation6 + $0x8] sm:$0xff]
        %v317 = vld [vmem:[#allocation6 + $0x10] sm:$0xff]
        %v318 = vld [vmem:[#allocation6 + $0x18] sm:$0xff]
        %v319 = vpack.c.bf16 %v316, %v315
        %v320 = vpack.c.bf16 %v318, %v317
        %v321 = vld [vmem:[%s3] sm:$0x1]
        %v323 = vlaneseq
        %v324 = vshrl.u32 %v323, 7
        %v325 = vsub.s32 0, %v324
        %v326 = vrot.slane %v321, %v325
        %vm328 = vcmask 261120
        %v330 = vsel %vm328, %v314, 0
        %332 = vmatprep.subr.bf16.mxu0 0
        %333 = vmatpush1.bf16.msra.mxu0 %v319
        %334 = vmatprep.subr.bf16.mxu0 0
        %335 = vmatpush1.bf16.msra.mxu0 %v320
        %336 = vmatprep.subr.bf16.mxu0 0
        %337 = vmatpush1.bf16.msra.mxu0 0
        %338 = vmatprep.subr.bf16.mxu0 0
        %339 = vmatpush1.bf16.msra.mxu0 0
        %340 = vmatprep.subr.bf16.mxu0 0
        %341 = vmatpush1.bf16.msra.mxu0 0
        %342 = vmatprep.subr.bf16.mxu0 0
        %343 = vmatpush1.bf16.msra.mxu0 0
        %344 = vmatprep.subr.bf16.mxu0 0
        %345 = vmatpush1.bf16.msra.mxu0 0
        %346 = vmatprep.subr.bf16.mxu0 0
        %347 = vmatpush1.bf16.msra.mxu0 0
        %348 = vmatprep.subr.bf16.mxu0 0
        %349 = vmatpush1.bf16.msra.mxu0 0
        %350 = vmatprep.subr.bf16.mxu0 0
        %351 = vmatpush1.bf16.msra.mxu0 0
        %352 = vmatprep.subr.bf16.mxu0 0
        %353 = vmatpush1.bf16.msra.mxu0 0
        %354 = vmatprep.subr.bf16.mxu0 0
        %355 = vmatpush1.bf16.msra.mxu0 0
        %356 = vmatprep.subr.bf16.mxu0 0
        %357 = vmatpush1.bf16.msra.mxu0 0
        %358 = vmatprep.subr.bf16.mxu0 0
        %359 = vmatpush1.bf16.msra.mxu0 0
        %360 = vmatprep.subr.bf16.mxu0 0
        %361 = vmatpush1.bf16.msra.mxu0 0
        %362 = vmatprep.subr.bf16.mxu0 0
        %363 = vmatpush1.bf16.msra.mxu0 0
        %364 = vmatprep.mubr.bf16.mxu0 0
        %365 = vmatmul.mubr.bf16.gmra.mrb[0].mxu0 %v330
        %v366 = vpop.f32.mrb[0].mxu0
        %v367 = vadd.f32 %v326, %v366
        %v368 = vpop.f32.mrb[0].mxu0
        %v369 = vpop.f32.mrb[0].mxu0
        %v370 = vpop.f32.mrb[0].mxu0
        %371 = vdwg.mxu0
        %v372 = vmul.f32 %v367, 0.35355338
        %374 = vrot.lane.b32.xlu0 %v372, 120
        %v375 = vpop.permute.xlu0 %374
        %377 = vrot.lane.b32.xlu0 %v372, 112
        %v378 = vpop.permute.xlu0 %377
        %380 = vrot.lane.b32.xlu0 %v372, 104
        %v381 = vpop.permute.xlu0 %380
        %v383 = vpack.c.bf16 %v372, %v372
        %v384 = vpack.c.bf16 %v375, %v375
        %v385 = vpack.c.bf16 %v378, %v378
        %v386 = vpack.c.bf16 %v381, %v381
        %388 = vrot.lane.b32.xlu0 %v367, 120
        %v389 = vpop.permute.xlu0 %388
        %391 = vrot.lane.b32.xlu0 %v367, 112
        %v392 = vpop.permute.xlu0 %391
        %394 = vrot.lane.b32.xlu0 %v367, 104
        %v395 = vpop.permute.xlu0 %394
        %v397 = vpack.c.bf16 %v367, %v367
        %v398 = vpack.c.bf16 %v389, %v389
        %v399 = vpack.c.bf16 %v392, %v392
        %v400 = vpack.c.bf16 %v395, %v395
        %402 = vrot.lane.b32.xlu0 %v397, 96
        %v403 = vpop.permute.xlu0 %402
        %vm404 = vcmask 64512
        %v406 = vsel %vm404, %v383, 0
        %v409 = vsel %vm404, %v403, 0
        %411 = vmatprep.subr.bf16.mxu0 0
        %412 = vmatpush1.bf16.xpose.msra.mxu0 %v409
        %413 = vmatprep.subr.bf16.mxu0 0
        %414 = vmatpush1.bf16.xpose.msra.mxu0 0
        %415 = vmatprep.subr.bf16.mxu0 0
        %416 = vmatpush1.bf16.xpose.msra.mxu0 0
        %417 = vmatprep.subr.bf16.mxu0 0
        %418 = vmatpush1.bf16.xpose.msra.mxu0 0
        %419 = vmatprep.subr.bf16.mxu0 0
        %420 = vmatpush1.bf16.xpose.msra.mxu0 0
        %421 = vmatprep.subr.bf16.mxu0 0
        %422 = vmatpush1.bf16.xpose.msra.mxu0 0
        %423 = vmatprep.subr.bf16.mxu0 0
        %424 = vmatpush1.bf16.xpose.msra.mxu0 0
        %425 = vmatprep.subr.bf16.mxu0 0
        %426 = vmatpush1.bf16.xpose.msra.mxu0 0
        %427 = vmatprep.subr.bf16.mxu0 0
        %428 = vmatpush1.bf16.xpose.msra.mxu0 0
        %429 = vmatprep.subr.bf16.mxu0 0
        %430 = vmatpush1.bf16.xpose.msra.mxu0 0
        %431 = vmatprep.subr.bf16.mxu0 0
        %432 = vmatpush1.bf16.xpose.msra.mxu0 0
        %433 = vmatprep.subr.bf16.mxu0 0
        %434 = vmatpush1.bf16.xpose.msra.mxu0 0
        %435 = vmatprep.subr.bf16.mxu0 0
        %436 = vmatpush1.bf16.xpose.msra.mxu0 0
        %437 = vmatprep.subr.bf16.mxu0 0
        %438 = vmatpush1.bf16.xpose.msra.mxu0 0
        %439 = vmatprep.subr.bf16.mxu0 0
        %440 = vmatpush1.bf16.xpose.msra.mxu0 0
        %441 = vmatprep.subr.bf16.mxu0 0
        %442 = vmatpush1.bf16.xpose.msra.mxu0 0
        %443 = vmatprep.mubr.bf16.mxu0 0
        %444 = vmatmul.mubr.bf16.gmra.mrb[0].mxu0 %v406
        %v445 = vpop.f32.mrb[0].mxu0
        %v446 = vadd.f32 0.0, %v445
        %v447 = vpop.f32.mrb[0].mxu0
        %v448 = vpop.f32.mrb[0].mxu0
        %v449 = vpop.f32.mrb[0].mxu0
        %450 = vdwg.mxu0
        %452 = vrot.lane.b32.xlu0 %v398, 96
        %v453 = vpop.permute.xlu0 %452
        %v455 = vsel %vm404, %v384, 0
        %v458 = vsel %vm404, %v453, 0
        %460 = vmatprep.subr.bf16.mxu0 0
        %461 = vmatpush1.bf16.xpose.msra.mxu0 %v458
        %462 = vmatprep.subr.bf16.mxu0 0
        %463 = vmatpush1.bf16.xpose.msra.mxu0 0
        %464 = vmatprep.subr.bf16.mxu0 0
        %465 = vmatpush1.bf16.xpose.msra.mxu0 0
        %466 = vmatprep.subr.bf16.mxu0 0
        %467 = vmatpush1.bf16.xpose.msra.mxu0 0
        %468 = vmatprep.subr.bf16.mxu0 0
        %469 = vmatpush1.bf16.xpose.msra.mxu0 0
        %470 = vmatprep.subr.bf16.mxu0 0
        %471 = vmatpush1.bf16.xpose.msra.mxu0 0
        %472 = vmatprep.subr.bf16.mxu0 0
        %473 = vmatpush1.bf16.xpose.msra.mxu0 0
        %474 = vmatprep.subr.bf16.mxu0 0
        %475 = vmatpush1.bf16.xpose.msra.mxu0 0
        %476 = vmatprep.subr.bf16.mxu0 0
        %477 = vmatpush1.bf16.xpose.msra.mxu0 0
        %478 = vmatprep.subr.bf16.mxu0 0
        %479 = vmatpush1.bf16.xpose.msra.mxu0 0
        %480 = vmatprep.subr.bf16.mxu0 0
        %481 = vmatpush1.bf16.xpose.msra.mxu0 0
        %482 = vmatprep.subr.bf16.mxu0 0
        %483 = vmatpush1.bf16.xpose.msra.mxu0 0
        %484 = vmatprep.subr.bf16.mxu0 0
        %485 = vmatpush1.bf16.xpose.msra.mxu0 0
        %486 = vmatprep.subr.bf16.mxu0 0
        %487 = vmatpush1.bf16.xpose.msra.mxu0 0
        %488 = vmatprep.subr.bf16.mxu0 0
        %489 = vmatpush1.bf16.xpose.msra.mxu0 0
        %490 = vmatprep.subr.bf16.mxu0 0
        %491 = vmatpush1.bf16.xpose.msra.mxu0 0
        %492 = vmatprep.mubr.bf16.mxu0 0
        %493 = vmatmul.mubr.bf16.gmra.mrb[0].mxu0 %v455
        %v494 = vpop.f32.mrb[0].mxu0
        %v495 = vadd.f32 0.0, %v494
        %v496 = vpop.f32.mrb[0].mxu0
        %v497 = vpop.f32.mrb[0].mxu0
        %v498 = vpop.f32.mrb[0].mxu0
        %499 = vdwg.mxu0
        %501 = vrot.lane.b32.xlu0 %v399, 96
        %v502 = vpop.permute.xlu0 %501
        %v504 = vsel %vm404, %v385, 0
        %v507 = vsel %vm404, %v502, 0
        %509 = vmatprep.subr.bf16.mxu0 0
        %510 = vmatpush1.bf16.xpose.msra.mxu0 %v507
        %511 = vmatprep.subr.bf16.mxu0 0
        %512 = vmatpush1.bf16.xpose.msra.mxu0 0
        %513 = vmatprep.subr.bf16.mxu0 0
        %514 = vmatpush1.bf16.xpose.msra.mxu0 0
        %515 = vmatprep.subr.bf16.mxu0 0
        %516 = vmatpush1.bf16.xpose.msra.mxu0 0
        %517 = vmatprep.subr.bf16.mxu0 0
        %518 = vmatpush1.bf16.xpose.msra.mxu0 0
        %519 = vmatprep.subr.bf16.mxu0 0
        %520 = vmatpush1.bf16.xpose.msra.mxu0 0
        %521 = vmatprep.subr.bf16.mxu0 0
        %522 = vmatpush1.bf16.xpose.msra.mxu0 0
        %523 = vmatprep.subr.bf16.mxu0 0
        %524 = vmatpush1.bf16.xpose.msra.mxu0 0
        %525 = vmatprep.subr.bf16.mxu0 0
        %526 = vmatpush1.bf16.xpose.msra.mxu0 0
        %527 = vmatprep.subr.bf16.mxu0 0
        %528 = vmatpush1.bf16.xpose.msra.mxu0 0
        %529 = vmatprep.subr.bf16.mxu0 0
        %530 = vmatpush1.bf16.xpose.msra.mxu0 0
        %531 = vmatprep.subr.bf16.mxu0 0
        %532 = vmatpush1.bf16.xpose.msra.mxu0 0
        %533 = vmatprep.subr.bf16.mxu0 0
        %534 = vmatpush1.bf16.xpose.msra.mxu0 0
        %535 = vmatprep.subr.bf16.mxu0 0
        %536 = vmatpush1.bf16.xpose.msra.mxu0 0
        %537 = vmatprep.subr.bf16.mxu0 0
        %538 = vmatpush1.bf16.xpose.msra.mxu0 0
        %539 = vmatprep.subr.bf16.mxu0 0
        %540 = vmatpush1.bf16.xpose.msra.mxu0 0
        %541 = vmatprep.mubr.bf16.mxu0 0
        %542 = vmatmul.mubr.bf16.gmra.mrb[0].mxu0 %v504
        %v543 = vpop.f32.mrb[0].mxu0
        %v544 = vadd.f32 0.0, %v543
        %v545 = vpop.f32.mrb[0].mxu0
        %v546 = vpop.f32.mrb[0].mxu0
        %v547 = vpop.f32.mrb[0].mxu0
        %548 = vdwg.mxu0
        %550 = vrot.lane.b32.xlu0 %v400, 96
        %v551 = vpop.permute.xlu0 %550
        %v553 = vsel %vm404, %v386, 0
        %v556 = vsel %vm404, %v551, 0
        %558 = vmatprep.subr.bf16.mxu0 0
        %559 = vmatpush1.bf16.xpose.msra.mxu0 %v556
        %560 = vmatprep.subr.bf16.mxu0 0
        %561 = vmatpush1.bf16.xpose.msra.mxu0 0
        %562 = vmatprep.subr.bf16.mxu0 0
        %563 = vmatpush1.bf16.xpose.msra.mxu0 0
        %564 = vmatprep.subr.bf16.mxu0 0
        %565 = vmatpush1.bf16.xpose.msra.mxu0 0
        %566 = vmatprep.subr.bf16.mxu0 0
        %567 = vmatpush1.bf16.xpose.msra.mxu0 0
        %568 = vmatprep.subr.bf16.mxu0 0
        %569 = vmatpush1.bf16.xpose.msra.mxu0 0
        %570 = vmatprep.subr.bf16.mxu0 0
        %571 = vmatpush1.bf16.xpose.msra.mxu0 0
        %572 = vmatprep.subr.bf16.mxu0 0
        %573 = vmatpush1.bf16.xpose.msra.mxu0 0
        %574 = vmatprep.subr.bf16.mxu0 0
        %575 = vmatpush1.bf16.xpose.msra.mxu0 0
        %576 = vmatprep.subr.bf16.mxu0 0
        %577 = vmatpush1.bf16.xpose.msra.mxu0 0
        %578 = vmatprep.subr.bf16.mxu0 0
        %579 = vmatpush1.bf16.xpose.msra.mxu0 0
        %580 = vmatprep.subr.bf16.mxu0 0
        %581 = vmatpush1.bf16.xpose.msra.mxu0 0
        %582 = vmatprep.subr.bf16.mxu0 0
        %583 = vmatpush1.bf16.xpose.msra.mxu0 0
        %584 = vmatprep.subr.bf16.mxu0 0
        %585 = vmatpush1.bf16.xpose.msra.mxu0 0
        %586 = vmatprep.subr.bf16.mxu0 0
        %587 = vmatpush1.bf16.xpose.msra.mxu0 0
        %588 = vmatprep.subr.bf16.mxu0 0
        %589 = vmatpush1.bf16.xpose.msra.mxu0 0
        %590 = vmatprep.mubr.bf16.mxu0 0
        %591 = vmatmul.mubr.bf16.gmra.mrb[0].mxu0 %v553
        %v592 = vpop.f32.mrb[0].mxu0
        %v593 = vadd.f32 0.0, %v592
        %v594 = vpop.f32.mrb[0].mxu0
        %v595 = vpop.f32.mrb[0].mxu0
        %v596 = vpop.f32.mrb[0].mxu0
        %597 = vdwg.mxu0
        %v598 = vsel %vm313, 1, 0
        %v599 = vlaneseq
        %v600 = vshrl.u32 %v599, 7
        %v601 = vsub.s32 0, %v600
        %v602 = vrot.slane %v598, %v601
        %vm603 = vcmp.eq.s32.totalorder %v602, 1
        %v604 = vsel %vm603, -1e+10, %v446
        %v605 = vsel %vm603, -1e+10, %v495
        %v606 = vsel %vm603, -1e+10, %v544
        %v607 = vsel %vm603, -1e+10, %v593
        %v608 = vsel %vm404, %v604, -inf
        %609 = vmax.xlane.f32.xlu0 %v608
        %v610 = vpop.xlane.xlu0 %609
        %v611 = vsel %vm404, %v605, -inf
        %612 = vmax.xlane.f32.xlu0 %v611
        %v613 = vpop.xlane.xlu0 %612
        %v614 = vsel %vm404, %v606, -inf
        %615 = vmax.xlane.f32.xlu0 %v614
        %v616 = vpop.xlane.xlu0 %615
        %v617 = vsel %vm404, %v607, -inf
        %618 = vmax.xlane.f32.xlu0 %v617
        %v619 = vpop.xlane.xlu0 %618
        %v620 = vsub.f32 %v604, %v610
        %v621 = vsub.f32 %v605, %v613
        %v622 = vsub.f32 %v606, %v616
        %v623 = vsub.f32 %v607, %v619
        %v624 = vmul.f32 %v620, 1.442695
        %v625 = vpow.pop %v624
        %v626 = vmul.f32 %v621, 1.442695
        %v627 = vpow.pop %v626
        %v628 = vmul.f32 %v622, 1.442695
        %v629 = vpow.pop %v628
        %v630 = vmul.f32 %v623, 1.442695
        %v631 = vpow.pop %v630
        %v632 = vsel %vm404, %v625, 0.0
        %633 = vadd.xlane.f32.xlu0 %v632
        %v634 = vpop.xlane.xlu0 %633
        %v635 = vsel %vm404, %v627, 0.0
        %636 = vadd.xlane.f32.xlu0 %v635
        %v637 = vpop.xlane.xlu0 %636
        %v638 = vsel %vm404, %v629, 0.0
        %639 = vadd.xlane.f32.xlu0 %v638
        %v640 = vpop.xlane.xlu0 %639
        %v641 = vsel %vm404, %v631, 0.0
        %642 = vadd.xlane.f32.xlu0 %v641
        %v643 = vpop.xlane.xlu0 %642
        %v644 = vrcp.pop %v634
        %v645 = vrcp.pop %v637
        %v646 = vrcp.pop %v640
        %v647 = vrcp.pop %v643
        %v648 = vmul.f32 %v625, %v644
        %v649 = vmul.f32 %v627, %v645
        %v650 = vmul.f32 %v629, %v646
        %v651 = vmul.f32 %v631, %v647
        %v652 = vpack.c.bf16 %v648, %v648
        %v653 = vpack.c.bf16 %v649, %v649
        %v654 = vpack.c.bf16 %v650, %v650
        %v655 = vpack.c.bf16 %v651, %v651
        %656 = vrot.lane.b32.xlu0 %v397, 64
        %v657 = vpop.permute.xlu0 %656
        %v659 = vsel %vm404, %v652, 0
        %vm661 = vcmask 1043456
        %v663 = vsel %vm661, %v657, 0
        %665 = vmatprep.subr.bf16.mxu0 0
        %666 = vmatpush1.bf16.msra.mxu0 %v663
        %667 = vmatprep.subr.bf16.mxu0 0
        %668 = vmatpush1.bf16.msra.mxu0 0
        %669 = vmatprep.subr.bf16.mxu0 0
        %670 = vmatpush1.bf16.msra.mxu0 0
        %671 = vmatprep.subr.bf16.mxu0 0
        %672 = vmatpush1.bf16.msra.mxu0 0
        %673 = vmatprep.subr.bf16.mxu0 0
        %674 = vmatpush1.bf16.msra.mxu0 0
        %675 = vmatprep.subr.bf16.mxu0 0
        %676 = vmatpush1.bf16.msra.mxu0 0
        %677 = vmatprep.subr.bf16.mxu0 0
        %678 = vmatpush1.bf16.msra.mxu0 0
        %679 = vmatprep.subr.bf16.mxu0 0
        %680 = vmatpush1.bf16.msra.mxu0 0
        %681 = vmatprep.subr.bf16.mxu0 0
        %682 = vmatpush1.bf16.msra.mxu0 0
        %683 = vmatprep.subr.bf16.mxu0 0
        %684 = vmatpush1.bf16.msra.mxu0 0
        %685 = vmatprep.subr.bf16.mxu0 0
        %686 = vmatpush1.bf16.msra.mxu0 0
        %687 = vmatprep.subr.bf16.mxu0 0
        %688 = vmatpush1.bf16.msra.mxu0 0
        %689 = vmatprep.subr.bf16.mxu0 0
        %690 = vmatpush1.bf16.msra.mxu0 0
        %691 = vmatprep.subr.bf16.mxu0 0
        %692 = vmatpush1.bf16.msra.mxu0 0
        %693 = vmatprep.subr.bf16.mxu0 0
        %694 = vmatpush1.bf16.msra.mxu0 0
        %695 = vmatprep.subr.bf16.mxu0 0
        %696 = vmatpush1.bf16.msra.mxu0 0
        %697 = vmatprep.mubr.bf16.mxu0 0
        %698 = vmatmul.mubr.bf16.gmra.mrb[0].mxu0 %v659
        %v699 = vpop.f32.mrb[0].mxu0
        %v700 = vadd.f32 0.0, %v699
        %v701 = vpop.f32.mrb[0].mxu0
        %v702 = vpop.f32.mrb[0].mxu0
        %v703 = vpop.f32.mrb[0].mxu0
        %704 = vdwg.mxu0
        %705 = vrot.lane.b32.xlu0 %v398, 64
        %v706 = vpop.permute.xlu0 %705
        %v708 = vsel %vm404, %v653, 0
        %v711 = vsel %vm661, %v706, 0
        %713 = vmatprep.subr.bf16.mxu0 0
        %714 = vmatpush1.bf16.msra.mxu0 %v711
        %715 = vmatprep.subr.bf16.mxu0 0
        %716 = vmatpush1.bf16.msra.mxu0 0
        %717 = vmatprep.subr.bf16.mxu0 0
        %718 = vmatpush1.bf16.msra.mxu0 0
        %719 = vmatprep.subr.bf16.mxu0 0
        %720 = vmatpush1.bf16.msra.mxu0 0
        %721 = vmatprep.subr.bf16.mxu0 0
        %722 = vmatpush1.bf16.msra.mxu0 0
        %723 = vmatprep.subr.bf16.mxu0 0
        %724 = vmatpush1.bf16.msra.mxu0 0
        %725 = vmatprep.subr.bf16.mxu0 0
        %726 = vmatpush1.bf16.msra.mxu0 0
        %727 = vmatprep.subr.bf16.mxu0 0
        %728 = vmatpush1.bf16.msra.mxu0 0
        %729 = vmatprep.subr.bf16.mxu0 0
        %730 = vmatpush1.bf16.msra.mxu0 0
        %731 = vmatprep.subr.bf16.mxu0 0
        %732 = vmatpush1.bf16.msra.mxu0 0
        %733 = vmatprep.subr.bf16.mxu0 0
        %734 = vmatpush1.bf16.msra.mxu0 0
        %735 = vmatprep.subr.bf16.mxu0 0
        %736 = vmatpush1.bf16.msra.mxu0 0
        %737 = vmatprep.subr.bf16.mxu0 0
        %738 = vmatpush1.bf16.msra.mxu0 0
        %739 = vmatprep.subr.bf16.mxu0 0
        %740 = vmatpush1.bf16.msra.mxu0 0
        %741 = vmatprep.subr.bf16.mxu0 0
        %742 = vmatpush1.bf16.msra.mxu0 0
        %743 = vmatprep.subr.bf16.mxu0 0
        %744 = vmatpush1.bf16.msra.mxu0 0
        %745 = vmatprep.mubr.bf16.mxu0 0
        %746 = vmatmul.mubr.bf16.gmra.mrb[0].mxu0 %v708
        %v747 = vpop.f32.mrb[0].mxu0
        %v748 = vadd.f32 0.0, %v747
        %v749 = vpop.f32.mrb[0].mxu0
        %v750 = vpop.f32.mrb[0].mxu0
        %v751 = vpop.f32.mrb[0].mxu0
        %752 = vdwg.mxu0
        %753 = vrot.lane.b32.xlu0 %v399, 64
        %v754 = vpop.permute.xlu0 %753
        %v756 = vsel %vm404, %v654, 0
        %v759 = vsel %vm661, %v754, 0
        %761 = vmatprep.subr.bf16.mxu0 0
        %762 = vmatpush1.bf16.msra.mxu0 %v759
        %763 = vmatprep.subr.bf16.mxu0 0
        %764 = vmatpush1.bf16.msra.mxu0 0
        %765 = vmatprep.subr.bf16.mxu0 0
        %766 = vmatpush1.bf16.msra.mxu0 0
        %767 = vmatprep.subr.bf16.mxu0 0
        %768 = vmatpush1.bf16.msra.mxu0 0
        %769 = vmatprep.subr.bf16.mxu0 0
        %770 = vmatpush1.bf16.msra.mxu0 0
        %771 = vmatprep.subr.bf16.mxu0 0
        %772 = vmatpush1.bf16.msra.mxu0 0
        %773 = vmatprep.subr.bf16.mxu0 0
        %774 = vmatpush1.bf16.msra.mxu0 0
        %775 = vmatprep.subr.bf16.mxu0 0
        %776 = vmatpush1.bf16.msra.mxu0 0
        %777 = vmatprep.subr.bf16.mxu0 0
        %778 = vmatpush1.bf16.msra.mxu0 0
        %779 = vmatprep.subr.bf16.mxu0 0
        %780 = vmatpush1.bf16.msra.mxu0 0
        %781 = vmatprep.subr.bf16.mxu0 0
        %782 = vmatpush1.bf16.msra.mxu0 0
        %783 = vmatprep.subr.bf16.mxu0 0
        %784 = vmatpush1.bf16.msra.mxu0 0
        %785 = vmatprep.subr.bf16.mxu0 0
        %786 = vmatpush1.bf16.msra.mxu0 0
        %787 = vmatprep.subr.bf16.mxu0 0
        %788 = vmatpush1.bf16.msra.mxu0 0
        %789 = vmatprep.subr.bf16.mxu0 0
        %790 = vmatpush1.bf16.msra.mxu0 0
        %791 = vmatprep.subr.bf16.mxu0 0
        %792 = vmatpush1.bf16.msra.mxu0 0
        %793 = vmatprep.mubr.bf16.mxu0 0
        %794 = vmatmul.mubr.bf16.gmra.mrb[0].mxu0 %v756
        %v795 = vpop.f32.mrb[0].mxu0
        %v796 = vadd.f32 0.0, %v795
        %v797 = vpop.f32.mrb[0].mxu0
        %v798 = vpop.f32.mrb[0].mxu0
        %v799 = vpop.f32.mrb[0].mxu0
        %800 = vdwg.mxu0
        %801 = vrot.lane.b32.xlu0 %v400, 64
        %v802 = vpop.permute.xlu0 %801
        %v804 = vsel %vm404, %v655, 0
        %v807 = vsel %vm661, %v802, 0
        %809 = vmatprep.subr.bf16.mxu0 0
        %810 = vmatpush1.bf16.msra.mxu0 %v807
        %811 = vmatprep.subr.bf16.mxu0 0
        %812 = vmatpush1.bf16.msra.mxu0 0
        %813 = vmatprep.subr.bf16.mxu0 0
        %814 = vmatpush1.bf16.msra.mxu0 0
        %815 = vmatprep.subr.bf16.mxu0 0
        %816 = vmatpush1.bf16.msra.mxu0 0
        %817 = vmatprep.subr.bf16.mxu0 0
        %818 = vmatpush1.bf16.msra.mxu0 0
        %819 = vmatprep.subr.bf16.mxu0 0
        %820 = vmatpush1.bf16.msra.mxu0 0
        %821 = vmatprep.subr.bf16.mxu0 0
        %822 = vmatpush1.bf16.msra.mxu0 0
        %823 = vmatprep.subr.bf16.mxu0 0
        %824 = vmatpush1.bf16.msra.mxu0 0
        %825 = vmatprep.subr.bf16.mxu0 0
        %826 = vmatpush1.bf16.msra.mxu0 0
        %827 = vmatprep.subr.bf16.mxu0 0
        %828 = vmatpush1.bf16.msra.mxu0 0
        %829 = vmatprep.subr.bf16.mxu0 0
        %830 = vmatpush1.bf16.msra.mxu0 0
        %831 = vmatprep.subr.bf16.mxu0 0
        %832 = vmatpush1.bf16.msra.mxu0 0
        %833 = vmatprep.subr.bf16.mxu0 0
        %834 = vmatpush1.bf16.msra.mxu0 0
        %835 = vmatprep.subr.bf16.mxu0 0
        %836 = vmatpush1.bf16.msra.mxu0 0
        %837 = vmatprep.subr.bf16.mxu0 0
        %838 = vmatpush1.bf16.msra.mxu0 0
        %839 = vmatprep.subr.bf16.mxu0 0
        %840 = vmatpush1.bf16.msra.mxu0 0
        %841 = vmatprep.mubr.bf16.mxu0 0
        %842 = vmatmul.mubr.bf16.gmra.mrb[0].mxu0 %v804
        %v843 = vpop.f32.mrb[0].mxu0
        %v844 = vadd.f32 0.0, %v843
        %v845 = vpop.f32.mrb[0].mxu0
        %v846 = vpop.f32.mrb[0].mxu0
        %v847 = vpop.f32.mrb[0].mxu0
        %848 = vdwg.mxu0
        %849 = vst.msk [vmem:[#allocation2] sm:$0xff] %vm404, %v700
        %851 = vrot.lane.b32.xlu0 %v748, 8
        %v852 = vpop.permute.xlu0 %851
        %vm854 = vcmask 130112
        %855 = vst.msk [vmem:[#allocation2] sm:$0xff] %vm854, %v852
        %857 = vrot.lane.b32.xlu0 %v796, 16
        %v858 = vpop.permute.xlu0 %857
        %vm860 = vcmask 195712
        %861 = vst.msk [vmem:[#allocation2] sm:$0xff] %vm860, %v858
        %863 = vrot.lane.b32.xlu0 %v844, 24
        %v864 = vpop.permute.xlu0 %863
        %vm866 = vcmask 261312
        %867 = vst.msk [vmem:[#allocation2] sm:$0xff] %vm866, %v864
        %v868 = vld [vmem:[#allocation2] sm:$0xff]
        %v869 = vpack.c.bf16 %v868, %v868
        %v870 = vld [vmem:[#allocation8] sm:$0xff]
        %v871 = vld [vmem:[#allocation8 + $0x8] sm:$0xff]
        %v872 = vld [vmem:[#allocation8 + $0x10] sm:$0xff]
        %v873 = vld [vmem:[#allocation8 + $0x18] sm:$0xff]
        %v874 = vpack.c.bf16 %v871, %v870
        %v875 = vpack.c.bf16 %v873, %v872
        %v876 = vld [vmem:[%s5] sm:$0x1]
        %v878 = vlaneseq
        %v879 = vshrl.u32 %v878, 7
        %v880 = vsub.s32 0, %v879
        %v881 = vrot.slane %v876, %v880
        %v884 = vsel %vm328, %v869, 0
        %886 = vmatprep.subr.bf16.mxu0 0
        %887 = vmatpush1.bf16.msra.mxu0 %v874
        %888 = vmatprep.subr.bf16.mxu0 0
        %889 = vmatpush1.bf16.msra.mxu0 %v875
        %890 = vmatprep.subr.bf16.mxu0 0
        %891 = vmatpush1.bf16.msra.mxu0 0
        %892 = vmatprep.subr.bf16.mxu0 0
        %893 = vmatpush1.bf16.msra.mxu0 0
        %894 = vmatprep.subr.bf16.mxu0 0
        %895 = vmatpush1.bf16.msra.mxu0 0
        %896 = vmatprep.subr.bf16.mxu0 0
        %897 = vmatpush1.bf16.msra.mxu0 0
        %898 = vmatprep.subr.bf16.mxu0 0
        %899 = vmatpush1.bf16.msra.mxu0 0
        %900 = vmatprep.subr.bf16.mxu0 0
        %901 = vmatpush1.bf16.msra.mxu0 0
        %902 = vmatprep.subr.bf16.mxu0 0
        %903 = vmatpush1.bf16.msra.mxu0 0
        %904 = vmatprep.subr.bf16.mxu0 0
        %905 = vmatpush1.bf16.msra.mxu0 0
        %906 = vmatprep.subr.bf16.mxu0 0
        %907 = vmatpush1.bf16.msra.mxu0 0
        %908 = vmatprep.subr.bf16.mxu0 0
        %909 = vmatpush1.bf16.msra.mxu0 0
        %910 = vmatprep.subr.bf16.mxu0 0
        %911 = vmatpush1.bf16.msra.mxu0 0
        %912 = vmatprep.subr.bf16.mxu0 0
        %913 = vmatpush1.bf16.msra.mxu0 0
        %914 = vmatprep.subr.bf16.mxu0 0
        %915 = vmatpush1.bf16.msra.mxu0 0
        %916 = vmatprep.subr.bf16.mxu0 0
        %917 = vmatpush1.bf16.msra.mxu0 0
        %918 = vmatprep.mubr.bf16.mxu0 0
        %919 = vmatmul.mubr.bf16.gmra.mrb[0].mxu0 %v884
        %v920 = vpop.f32.mrb[0].mxu0
        %v921 = vadd.f32 %v881, %v920
        %v922 = vpop.f32.mrb[0].mxu0
        %v923 = vpop.f32.mrb[0].mxu0
        %v924 = vpop.f32.mrb[0].mxu0
        %925 = vdwg.mxu0
        %926 = vst.msk [vmem:[%s306] sm:$0xff] %vm328, %v921
        %s927 = sand.u32 %s168, 1
        %s928 = scalar_lea.sflag [#allocation5], %s927
        %s929 = sand.u32 %s168, 1
        %s930 = smul.addr %s929, 8
        %s931 = scalar_lea.vmem [#allocation9], %s930
        // Predicated region
        $region57: #{tpu_custom_call.1} parent=43 // pred_check
          %p932 = pneg %p178
        $region58: #{tpu_custom_call.1} parent=43 // pred_check_branch
          %934 = sbr.rel (%p932) target = $region60
        $region59: #{tpu_custom_call.1} parent=43 // pred_region
          %s936 = ssub.s32 128, 128
          %937 = vsyncadd %s928, %s936
          %s938 = smul.addr %s24, 128
          %s939 = scalar_lea.hbm %s6, %s938
          %s941 = sshll.u32 %s931, 4
          %s942 = int_to_ptr.vmem [resolvable:$true] %s941
          %944 = dma.vmem_to_hbm [thread:$0]  %s942, 128, %s939, %s928
        $region60: #{tpu_custom_call.1} parent=43 // pred_fallthru
          _
      $region44: #{tpu_custom_call.1} parent=5 // pred_fallthru
        _
      %p945 = scmp.le.s32.totalorder 2, %s19
      // Predicated region
      $region61: #{tpu_custom_call.1} parent=5 // pred_check
        %p946 = pneg %p945
      $region62: #{tpu_custom_call.1} parent=5 // pred_check_branch
        %948 = sbr.rel (%p946) target = $region64
      $region63: #{tpu_custom_call.1} parent=5 // pred_region
        %s949 = ssub.s32 %s19, 2
        // Predicated region
        $region65: #{tpu_custom_call.1} parent=63 // pred_check
          %p950 = pneg %p184
        $region66: #{tpu_custom_call.1} parent=63 // pred_check_branch
          %952 = sbr.rel (%p950) target = $region68
        $region67: #{tpu_custom_call.1} parent=63 // pred_region
          %s953 = sand.u32 %s169, 1
          %s954 = scalar_lea.sflag [#allocation5], %s953
          %s955 = sand.u32 %s169, 1
          %s956 = smul.addr %s955, 8
          %s957 = scalar_lea.vmem [#allocation9], %s956
          %958 = dma.done %s954, 128
        $region68: #{tpu_custom_call.1} parent=63 // pred_fallthru
          _
      $region64: #{tpu_custom_call.1} parent=5 // pred_fallthru
        _
    $region6: #{tpu_custom_call.1} parent=1 // loop_footer
      %s23 = sadd.s32 1, %s19
    $region7: #{tpu_custom_call.1} parent=1 // loop_footer_branch
      %18 = sbr.rel target = $region3
    $region8: #{tpu_custom_call.1} parent=1 // loop_exit
      _
    %959 = vsyncpa [#allocation4], 1
    %s960 = scalar_lea.sflag [#allocation4], 1
    %961 = vsyncpa %s960, 1
    %962 = vsyncpa [#allocation7], 1
    %963 = vsyncpa [#allocation5], 1
    %s964 = scalar_lea.sflag [#allocation5], 1
    %965 = vsyncpa %s964, 1

</llo_original>
